<compile_context>
chip_gen: v7x
topology: tpu7x:2x2x1
jax: 0.10.0
libtpu: 0.0.40
codegen_flags: <defaults>
</compile_context>

<pallas_src>
import numpy as np
import jax
import jax.numpy as jnp
from jax.experimental import pallas as pl
from jax.experimental.pallas import tpu as pltpu

NUSC_CLASS_FREQ = np.array([
    944004, 1897170, 152386, 2391677, 16957802, 724139, 189027, 2074468,
    413451, 2384460, 5916653, 175883646, 4275424, 51393615, 61411620,
    105975596, 116424404, 1892500630])

NUM_CLASSES = len(NUSC_CLASS_FREQ)   # 18
SCORE_THRESHOLD = 0.3
MIN_SEM_SCORE = 0.01


# --------------------------------------------------------------------------- #
# Kernel
# --------------------------------------------------------------------------- #
def _make_merge_semseg_kernel(num_classes, c_keep, compute_dtype):
    empty_id = num_classes - 1

    def kernel(cls_ref, mask_ref, id_ref):
        # cls_ref : (1, Q, c_keep)  preprocessed class probs (resident per b)
        # mask_ref: (1, Q, TN)      mask logits for this voxel tile
        # id_ref  : (1, 1, TN)      int8 semantic id per voxel

        cls_probs = cls_ref[0]                                         # (Q, c_keep)

        # Native compute-dtype sigmoid over the dominant stream (bf16 VPU/EUP
        # on v6e/v7x; the compiler re-inserts an upcast on v5e).  Sub-bf16
        # (fp8/int8) inputs are upcast before the sigmoid.
        x = mask_ref[0]
        if x.dtype != compute_dtype:
            x = x.astype(compute_dtype)
        mask_pred = jax.nn.sigmoid(x)                                  # (Q, TN)

        # semseg = einsum('qc,qn->cn'): contract over queries on the MXU,
        # bf16 operands / f32 accumulation.
        semseg = jax.lax.dot_general(
            cls_probs, mask_pred,
            dimension_numbers=(((0,), (0,)), ((), ())),
            preferred_element_type=jnp.float32)                        # (c_keep, TN)

        # Argmax over classes (first occurrence on ties); a single max reduce
        # feeds both the winning index and the low-score guard.
        score = jnp.max(semseg, axis=0, keepdims=True)                 # (1, TN)
        class_idx = jax.lax.broadcasted_iota(jnp.int32, semseg.shape, 0)
        cand = jnp.where(semseg == score, class_idx, c_keep)
        cls_id = jnp.min(cand, axis=0, keepdims=True)                  # (1, TN)

        # cls_id[score < 0.01] = empty class
        cls_id = jnp.where(score < MIN_SEM_SCORE, empty_id, cls_id)
        # NaN / padded-column guard: keep ids inside [0, num_classes - 1].
        cls_id = jnp.minimum(cls_id, num_classes - 1)

        id_ref[0] = cls_id.astype(id_ref.dtype)

    return kernel


# --------------------------------------------------------------------------- #
# Host-side helpers
# --------------------------------------------------------------------------- #
def _preprocess_class(class_logits, num_classes, compute_dtype):
    """Tiny (B, Q, C) class preprocessing done once in XLA (free)."""
    mask_cls = jax.nn.sigmoid(class_logits.astype(jnp.float32))        # (B, Q, C)
    q_max = jnp.max(mask_cls, axis=-1, keepdims=True)                  # (B, Q, 1)
    mask_cls = jnp.where(q_max > SCORE_THRESHOLD, mask_cls, 0.0)
    if mask_cls.shape[-1] == num_classes:
        mask_cls = mask_cls[..., :-1]                                  # drop "empty"
    return mask_cls.astype(compute_dtype)


def _vmem_capacity_bytes():
    try:
        cap = int(pltpu.get_tpu_info().vmem_capacity_bytes)
        if cap > 0:
            return cap
    except Exception:
        pass
    return 64 * 1024 * 1024   # conservative fallback (v7x per-TC capacity)


def _per_col_bytes(q, c_keep, in_itemsize, out_itemsize):
    # Live VMEM bytes per voxel column:
    #   2x double-buffered input block + compute-dtype sigmoid copy +
    #   (c_keep, TN) f32 product + (c_keep, TN) i32 argmax candidates +
    #   score row + double-buffered output block.
    return q * (2 * in_itemsize + 2) + c_keep * 8 + 8 + 2 * out_itemsize


def _pick_tile_n(q, n, c_keep, in_itemsize, out_itemsize, budget_bytes):
    """Voxel-axis tile: lane-dense multiple of 128 fitting the VMEM budget."""
    per_col = _per_col_bytes(q, c_keep, in_itemsize, out_itemsize)
    tn = budget_bytes // max(per_col, 1)
    tn = (tn // 128) * 128
    tn = max(128, min(32768, tn))
    if tn >= n:
        return n                        # block == full dim is always legal
    return tn


def merge_semseg(class_preds_logits, mask_preds_logits, *,
                 num_classes=NUM_CLASSES,
                 tile_n=None,
                 compute_dtype=jnp.bfloat16,
                 out_dtype=jnp.int8,
                 vmem_limit_bytes=None):
    """Pallas implementation of SparseOccHead.merge_semseg (sigmoid included)."""
    B, Q, C = class_preds_logits.shape
    Bm, Qm, N = mask_preds_logits.shape
    assert (B, Q) == (Bm, Qm)

    # Hoisted class preprocessing (matches PyTorch: trailing "empty" class
    # dropped only when the class dim equals num_classes).
    cls_probs = _preprocess_class(class_preds_logits, num_classes, compute_dtype)
    c_keep = cls_probs.shape[-1]

    in_itemsize = jnp.dtype(mask_preds_logits.dtype).itemsize
    out_itemsize = jnp.dtype(out_dtype).itemsize

    vmem_cap = _vmem_capacity_bytes()
    budget = (3 * vmem_cap) // 8          # ~24 MiB on v7x, ~48 MiB on v5e/v6e

    if tile_n is None:
        tile_n = _pick_tile_n(Q, N, c_keep, in_itemsize, out_itemsize, budget)
    tile_n = min(tile_n, N)
    n_tiles = pl.cdiv(N, tile_n)

    if vmem_limit_bytes is None:
        per_col = _per_col_bytes(Q, c_keep, in_itemsize, out_itemsize)
        need = tile_n * per_col + 2 * Q * c_keep * 2 + (4 << 20)
        # Never below a 32 MiB floor (v5e scoped default is only 16 MiB),
        # never above ~75% of this generation's physical VMEM.
        vmem_limit_bytes = int(min(max(32 << 20, need), (3 * vmem_cap) // 4))

    kernel = _make_merge_semseg_kernel(num_classes, c_keep, compute_dtype)

    out = pl.pallas_call(
        kernel,
        out_shape=jax.ShapeDtypeStruct((B, 1, N), out_dtype),
        grid=(B, n_tiles),
        in_specs=[
            # tiny class tile: index_map independent of the N axis -> resident
            pl.BlockSpec((1, Q, c_keep), lambda b, n: (b, 0, 0)),
            # big mask tile: streamed along the voxel axis
            pl.BlockSpec((1, Q, tile_n), lambda b, n: (b, 0, n)),
        ],
        out_specs=pl.BlockSpec((1, 1, tile_n), lambda b, n: (b, 0, n)),
        compiler_params=pltpu.CompilerParams(
            # No cross-N-tile state anymore -> both axes "parallel" so the
            # voxel axis can shard across v7x's two TensorCores (B=1 case).
            dimension_semantics=("parallel", "parallel"),
            vmem_limit_bytes=vmem_limit_bytes),
    )(cls_probs, mask_preds_logits)

    # int8 ids (<= 17) inside the kernel cut writeback 4x; widen for callers.
    return out.reshape(B, N).astype(jnp.int32)


class SparseOccHeadPallas:
    """JAX/Pallas port of SparseOccHead (forward + merge_occ_pred/merge_semseg)."""

    def __init__(self, num_classes=NUM_CLASSES, panoptic=False):
        self.num_classes = num_classes
        self.score_threshold = SCORE_THRESHOLD
        self.overlap_threshold = 0.8
        self.panoptic = panoptic
        # Deterministic, same as the PyTorch __init__ (used only by the loss).
        self.class_weights = jnp.asarray(1.0 / np.log(NUSC_CLASS_FREQ + 0.001),
                                         dtype=jnp.float32)

    def forward(self, occ_preds, mask_preds, class_preds):
        # Matches the PyTorch forward: pass transformer outputs through.
        return {'occ_preds': occ_preds,
                'mask_preds': mask_preds,
                'class_preds': class_preds}

    def merge_occ_pred(self, outs, **kwargs):
        class_logits = outs['class_preds'][-1]          # (B, Q, C) logits
        mask_logits = outs['mask_preds'][-1]            # (B, Q, N) logits
        occ_indices = outs['occ_preds'][-1][0]          # (B, N, 3)
        outs['sem_pred'] = merge_semseg(
            class_logits, mask_logits, num_classes=self.num_classes, **kwargs)
        outs['occ_loc'] = occ_indices
        # TODO(synk): panoptic merge (merge_panoseg_single) is sequential,
        #   data-dependent per-instance bookkeeping; no clean Pallas equivalent.
        return outs


# --------------------------------------------------------------------------- #
# References (for validation only)
# --------------------------------------------------------------------------- #
def _reference_semseg_scores(class_logits, mask_logits,
                             num_classes=NUM_CLASSES,
                             operand_dtype=jnp.float32):
    """Pure-JAX semseg scores (B, c_keep, N) with selectable operand dtype."""
    mask_cls = jax.nn.sigmoid(class_logits.astype(jnp.float32))
    valid = jnp.max(mask_cls, axis=-1, keepdims=True) > SCORE_THRESHOLD
    mask_cls = jnp.where(valid, mask_cls, 0.0)
    if mask_cls.shape[-1] == num_classes:
        mask_cls = mask_cls[..., :-1]
    mask_pred = jax.nn.sigmoid(mask_logits.astype(operand_dtype))
    return jnp.einsum('bqc,bqn->bcn',
                      mask_cls.astype(operand_dtype),
                      mask_pred.astype(operand_dtype),
                      preferred_element_type=jnp.float32)


def _reference_merge_semseg(class_logits, mask_logits,
                            num_classes=NUM_CLASSES,
                            operand_dtype=jnp.float32):
    semseg = _reference_semseg_scores(class_logits, mask_logits,
                                      num_classes, operand_dtype)
    score = jnp.max(semseg, axis=1)
    cls_id = jnp.argmax(semseg, axis=1).astype(jnp.int32)
    return jnp.where(score < MIN_SEM_SCORE, num_classes - 1, cls_id)


if __name__ == "__main__":
    key = jax.random.PRNGKey(0)
    B, Q, C, N = 2, 16, NUM_CLASSES, 512   # batch, queries, classes, voxels
    k1, k2, k3 = jax.random.split(key, 3)

    # Deterministic stand-in for the external transformer's outputs.
    class_pred_logits = jax.random.normal(k1, (B, Q, C), dtype=jnp.float32)
    # Keep the dominant (B, Q, N) stream in bf16 (halves HBM traffic); the
    # kernel applies the sigmoid natively in bf16 and feeds the MXU bf16 with
    # f32 accumulation.
    mask_pred_logits = jax.random.normal(
        k2, (B, Q, N), dtype=jnp.float32).astype(jnp.bfloat16)
    occ_loc = jax.random.randint(k3, (B, N, 3), 0, 16, dtype=jnp.int32)

    head = SparseOccHeadPallas()

    # forward(): dict of multi-stage predictions (single stage here).
    outs = head.forward(
        occ_preds=[(occ_loc, None, None, None, 1)],
        mask_preds=[mask_pred_logits],
        class_preds=[class_pred_logits],
    )

    # Default (auto tile_n) path.
    outs = head.merge_occ_pred(outs)
    sem_pred = jax.block_until_ready(outs['sem_pred'])

    # Forced multi-tile path (N tiled 4 x 128) — must match exactly.
    sem_pred_tiled = jax.block_until_ready(
        merge_semseg(class_pred_logits, mask_pred_logits, tile_n=128))

    # Ragged last tile (N=512 with TN=384 -> second tile only half valid):
    # exercises masked output stores on the padded columns.
    sem_pred_ragged = jax.block_until_ready(
        merge_semseg(class_pred_logits, mask_pred_logits, tile_n=384))

    assert sem_pred.shape == (B, N) and sem_pred.dtype == jnp.int32
    assert int(jnp.min(sem_pred)) >= 0 and int(jnp.max(sem_pred)) <= NUM_CLASSES - 1
    assert bool(jnp.all(sem_pred == sem_pred_tiled)), "N tiling changed the result"
    assert bool(jnp.all(sem_pred == sem_pred_ragged)), "ragged tile changed the result"

    # Matched-precision reference (bf16 sigmoid + bf16 MXU operands).  The
    # in-kernel bf16 sigmoid can differ from XLA's by 1 ulp, flipping argmax
    # only on near-ties, so this is a loose agreement check.
    ref_matched = jax.block_until_ready(_reference_merge_semseg(
        class_pred_logits, mask_pred_logits, operand_dtype=jnp.bfloat16))
    agree_matched = float(jnp.mean((sem_pred == ref_matched).astype(jnp.float32)))
    assert agree_matched >= 0.97, f"matched-precision agreement too low: {agree_matched}"

    # Full-f32 reference: exact agreement is required on every "confident"
    # voxel (top-2 class-score gap > 0.05 and score comfortably away from the
    # 0.01 empty-class threshold); ambiguous voxels may legitimately flip
    # under bf16 operand precision.
    semseg_f32 = _reference_semseg_scores(
        class_pred_logits, mask_pred_logits, operand_dtype=jnp.float32)
    score_f32 = jnp.max(semseg_f32, axis=1)
    ref_f32 = _reference_merge_semseg(
        class_pred_logits, mask_pred_logits, operand_dtype=jnp.float32)
    srt = jnp.sort(semseg_f32, axis=1)
    top2_gap = srt[:, -1, :] - srt[:, -2, :]
    confident = (top2_gap > 0.05) & (jnp.abs(score_f32 - MIN_SEM_SCORE) > 0.02)
    bad_confident = int(jnp.sum((sem_pred != ref_f32) & confident))
    assert bad_confident == 0, f"{bad_confident} confident voxels disagree with f32 ref"

    agree_f32 = float(jnp.mean((sem_pred == ref_f32).astype(jnp.float32)))
    assert agree_f32 >= 0.90, f"f32 reference agreement too low: {agree_f32}"

    print("KERNEL_OK")
</pallas_src>

<mosaic_0001>
module attributes {stable_mosaic.version = 11 : i64} {
  func.func @kernel(%arg0: i32, %arg1: i32, %arg2: memref<1x16x17xbf16, #tpu.memory_space<vmem>>, %arg3: memref<1x16x512xbf16, #tpu.memory_space<vmem>>, %arg4: memref<1x1x512xi8, #tpu.memory_space<vmem>>) attributes {dimension_semantics = [#tpu.dimension_semantics<parallel>, #tpu.dimension_semantics<parallel>], iteration_bounds = array<i64: 2, 1>, scalar_prefetch = 0 : i64, scratch_operands = 0 : i64, tpu.core_type = #tpu.core_type<tc>, window_params = [{transform_indices = @transform_0, window_bounds = array<i64: 1, 16, 17>}, {transform_indices = @transform_1, window_bounds = array<i64: 1, 16, 512>}, {transform_indices = @transform_2, window_bounds = array<i64: 1, 1, 512>}]} {
    %c0 = arith.constant 0 : index
    %c0_0 = arith.constant 0 : index
    %c0_1 = arith.constant 0 : index
    %0 = vector.load %arg2[%c0, %c0_0, %c0_1] : memref<1x16x17xbf16, #tpu.memory_space<vmem>>, vector<1x16x17xbf16>
    %1 = vector.shape_cast %0 : vector<1x16x17xbf16> to vector<16x17xbf16>
    %c0_2 = arith.constant 0 : index
    %c0_3 = arith.constant 0 : index
    %c0_4 = arith.constant 0 : index
    %2 = vector.load %arg3[%c0_2, %c0_3, %c0_4] : memref<1x16x512xbf16, #tpu.memory_space<vmem>>, vector<1x16x512xbf16>
    %3 = vector.shape_cast %2 : vector<1x16x512xbf16> to vector<16x512xbf16>
    %4 = arith.negf %3 : vector<16x512xbf16>
    %5 = math.exp %4 : vector<16x512xbf16>
    %cst = arith.constant 1.000000e+00 : bf16
    %6 = vector.broadcast %cst : bf16 to vector<16x512xbf16>
    %7 = arith.addf %6, %5 : vector<16x512xbf16>
    %8 = arith.divf %6, %7 : vector<16x512xbf16>
    %cst_5 = arith.constant dense<0.000000e+00> : vector<17x512xf32>
    %9 = tpu.matmul %1, %8, %cst_5 {dimension_numbers = #tpu.dot_dimension_numbers<[0], [0], [1], [1], [0, 1, 1, 1], [], []>} : vector<16x17xbf16>, vector<16x512xbf16>, vector<17x512xf32> -> vector<17x512xf32>
    %cst_6 = arith.constant dense<0xFF800000> : vector<512xf32>
    %10 = vector.multi_reduction <maximumf>, %9, %cst_6 [0] : vector<17x512xf32> to vector<512xf32>
    %11 = vector.shape_cast %10 : vector<512xf32> to vector<1x512xf32>
    %12 = tpu.iota {dimensions = array<i32: 0>} : vector<17x512xi32>
    %13 = vector.broadcast %11 : vector<1x512xf32> to vector<17x512xf32>
    %14 = arith.cmpf oeq, %9, %13 : vector<17x512xf32>
    %c17_i32 = arith.constant 17 : i32
    %15 = vector.broadcast %c17_i32 : i32 to vector<17x512xi32>
    %16 = arith.select %14, %12, %15 : vector<17x512xi1>, vector<17x512xi32>
    %cst_7 = arith.constant dense<2147483647> : vector<512xi32>
    %17 = vector.multi_reduction <minsi>, %16, %cst_7 [0] : vector<17x512xi32> to vector<512xi32>
    %18 = vector.shape_cast %17 : vector<512xi32> to vector<1x512xi32>
    %cst_8 = arith.constant 0.00999999977 : f32
    %19 = vector.broadcast %cst_8 : f32 to vector<1x512xf32>
    %20 = arith.cmpf olt, %11, %19 : vector<1x512xf32>
    %c17_i32_9 = arith.constant 17 : i32
    %21 = vector.broadcast %c17_i32_9 : i32 to vector<1x512xi32>
    %22 = arith.select %20, %21, %18 : vector<1x512xi1>, vector<1x512xi32>
    %c17_i32_10 = arith.constant 17 : i32
    %23 = vector.broadcast %c17_i32_10 : i32 to vector<1x512xi32>
    %24 = arith.minsi %22, %23 : vector<1x512xi32>
    %25 = arith.trunci %24 : vector<1x512xi32> to vector<1x512xi8>
    %c0_11 = arith.constant 0 : index
    %c0_12 = arith.constant 0 : index
    %c0_13 = arith.constant 0 : index
    %26 = vector.load %arg4[%c0_11, %c0_12, %c0_13] : memref<1x1x512xi8, #tpu.memory_space<vmem>>, vector<1x1x512xi8>
    %27 = vector.shape_cast %26 : vector<1x1x512xi8> to vector<1x512xi8>
    %28 = vector.shape_cast %25 : vector<1x512xi8> to vector<1x1x512xi8>
    tpu.vector_store %arg4[%c0_11, %c0_12, %c0_13], %28 {strides = array<i32>} : memref<1x1x512xi8, #tpu.memory_space<vmem>>, vector<1x1x512xi8>,
    return
  }
  func.func @transform_0(%arg0: i32, %arg1: i32) -> (i32, i32, i32) {
    %c0_i32 = arith.constant 0 : i32
    %c0_i32_0 = arith.constant 0 : i32
    %c0_i32_1 = arith.constant 0 : i32
    return %arg0, %c0_i32, %c0_i32_0 : i32, i32, i32
  }
  func.func @transform_1(%arg0: i32, %arg1: i32) -> (i32, i32, i32) {
    %c0_i32 = arith.constant 0 : i32
    %c0_i32_0 = arith.constant 0 : i32
    return %arg0, %c0_i32, %arg1 : i32, i32, i32
  }
  func.func @transform_2(%arg0: i32, %arg1: i32) -> (i32, i32, i32) {
    %c0_i32 = arith.constant 0 : i32
    %c0_i32_0 = arith.constant 0 : i32
    return %arg0, %c0_i32, %arg1 : i32, i32, i32
  }
}

</mosaic_0001>

<llo_original>
// kernel: tpu_custom_call.1
$region0: #{tpu_custom_call.1}
  #allocation0 [shape = 'u32[]', space=smem, size = 0x4, offset = 0x4, fixed_abs, tag = 'smem constant byte address 0x4 - core index']
  #allocation1 [shape = 'u32[144,128]{1,0:T(1,128)}', space=vmem, size = 0x12000, scoped, tag = 'internal scratch']
  %s0 = inlined_call_operand.hbm [shape: bf16[2,16,17], index: 0, kind: input, shape index: {}]
  %s1 = inlined_call_operand.hbm [shape: bf16[2,16,512], index: 1, kind: input, shape index: {}]
  %s2 = inlined_call_operand.vmem [shape: s8[2,1,512], index: 2, kind: output, shape index: {}]
  %s3 = sld [smem:[#allocation0]]
  $region49: #{tpu_custom_call.1} parent=0
    _
  %s5 = ssub.s32 1, %s3
  %s6 = scalar_select 0, %s5, %s3
  $region1: #{tpu_custom_call.1} parent=0
    #allocation2 [shape = 'u8[8192]{0}', space=vmem, size = 0x2000, scoped, tag = 'input window, operand 0']
    #allocation3 [shape = 's32[2]{0}', space=sflag, size = 0x8, scoped, tag = 'scoped memory for tpu_custom_call.1']
    #allocation4 [shape = 'u8[32768]{0}', space=vmem, size = 0x8000, scoped, tag = 'input window, operand 1']
    #allocation5 [shape = 's32[2]{0}', space=sflag, size = 0x8, scoped, tag = 'scoped memory for tpu_custom_call.1']
    %7 = vsyncpa [#allocation3], 0
    %s8 = scalar_lea.sflag [#allocation3], 1
    %9 = vsyncpa %s8, 0
    %10 = vsyncpa [#allocation5], 0
    %s11 = scalar_lea.sflag [#allocation5], 1
    %12 = vsyncpa %s11, 0
    loop: start=0, step=1, limit=4
    $region2: #{tpu_custom_call.1} parent=1 // loop_pre_header
      _
    $region3: #{tpu_custom_call.1} parent=1 // loop_header
      %s14 = sphi 0, %s18
      %p15 = scmp.ge.s32.totalorder %s14, 4
      %s21 = sphi 0, %s33
      %s22 = sphi 0, %s29
      %s23 = sphi 0, %s21
      %s24 = sphi 0, %s22
      %s25 = sphi 0, %s23
      %s26 = sphi 0, %s24
      %s36 = sphi 0, %s38
      %s39 = sphi 0, %s36
      %s40 = sphi 0, %s39
      %s56 = sphi 0, %s40
      %s64 = sphi 0, %s66
      %s67 = sphi 0, %s64
      %s68 = sphi 0, %s67
      %s84 = sphi 0, %s68
      %s92 = sphi 0, %s94
      %s95 = sphi 0, %s92
      %s96 = sphi 0, %s95
      %s112 = sphi 0, %s96
    $region4: #{tpu_custom_call.1} parent=1 // loop_header_branch
      %17 = sbr.rel (%p15) target = $region8
    $region5: #{tpu_custom_call.1} parent=1 // loop_body
      %s19 = ssub.s32 %s14, 1
      %s20 = ssub.s32 %s14, 2
      %s27 = sadd.s32 1, %s22
      %p28 = scmp.ge.s32.totalorder %s27, 1
      %s29 = scalar_select %p28, 0, %s27
      %s30 = sadd.s32 1, %s21
      %s31 = scalar_select %p28, %s30, %s21
      %p32 = scmp.ge.s32.totalorder %s31, 2
      %s33 = scalar_select %p32, 0, %s31
      %s34 = ssub.s32 %s21, %s33
      %p35 = scmp.eq.s32.totalorder %s34, 0
      %s37 = sadd.s32 %s36, 1
      %s38 = scalar_select %p35, %s36, %s37
      %p41 = pneg %p35
      %p42 = scmp.eq.s32.totalorder %s14, 1
      %p43 = por %p41, %p42
      %p44 = scmp.ne.s32.totalorder %s36, %s39
      %p45 = scmp.eq.s32.totalorder %s14, 0
      %p46 = por %p44, %p45
      %p47 = scmp.ne.s32.totalorder %s36, %s39
      %p48 = scmp.eq.s32.totalorder %s19, 1
      %p49 = por %p47, %p48
      %p50 = scmp.ne.s32.totalorder %s39, %s40
      %p51 = scmp.eq.s32.totalorder %s19, 0
      %p52 = por %p50, %p51
      %p53 = scmp.ne.s32.totalorder %s39, %s40
      %p54 = scmp.eq.s32.totalorder %s20, 1
      %p55 = por %p53, %p54
      %p57 = scmp.ne.s32.totalorder %s40, %s56
      %p58 = scmp.eq.s32.totalorder %s20, 0
      %p59 = por %p57, %p58
      %s60 = ssub.s32 %s21, %s33
      %s61 = ssub.s32 %s22, %s29
      %s62 = sor.u32 %s60, %s61
      %p63 = scmp.eq.s32.totalorder %s62, 0
      %s65 = sadd.s32 %s64, 1
      %s66 = scalar_select %p63, %s64, %s65
      %p69 = pneg %p63
      %p70 = scmp.eq.s32.totalorder %s14, 1
      %p71 = por %p69, %p70
      %p72 = scmp.ne.s32.totalorder %s64, %s67
      %p73 = scmp.eq.s32.totalorder %s14, 0
      %p74 = por %p72, %p73
      %p75 = scmp.ne.s32.totalorder %s64, %s67
      %p76 = scmp.eq.s32.totalorder %s19, 1
      %p77 = por %p75, %p76
      %p78 = scmp.ne.s32.totalorder %s67, %s68
      %p79 = scmp.eq.s32.totalorder %s19, 0
      %p80 = por %p78, %p79
      %p81 = scmp.ne.s32.totalorder %s67, %s68
      %p82 = scmp.eq.s32.totalorder %s20, 1
      %p83 = por %p81, %p82
      %p85 = scmp.ne.s32.totalorder %s68, %s84
      %p86 = scmp.eq.s32.totalorder %s20, 0
      %p87 = por %p85, %p86
      %s88 = ssub.s32 %s21, %s33
      %s89 = ssub.s32 %s22, %s29
      %s90 = sor.u32 %s88, %s89
      %p91 = scmp.eq.s32.totalorder %s90, 0
      %s93 = sadd.s32 %s92, 1
      %s94 = scalar_select %p91, %s92, %s93
      %p97 = pneg %p91
      %p98 = scmp.eq.s32.totalorder %s14, 1
      %p99 = por %p97, %p98
      %p100 = scmp.ne.s32.totalorder %s92, %s95
      %p101 = scmp.eq.s32.totalorder %s14, 0
      %p102 = por %p100, %p101
      %p103 = scmp.ne.s32.totalorder %s92, %s95
      %p104 = scmp.eq.s32.totalorder %s19, 1
      %p105 = por %p103, %p104
      %p106 = scmp.ne.s32.totalorder %s95, %s96
      %p107 = scmp.eq.s32.totalorder %s19, 0
      %p108 = por %p106, %p107
      %p109 = scmp.ne.s32.totalorder %s95, %s96
      %p110 = scmp.eq.s32.totalorder %s20, 1
      %p111 = por %p109, %p110
      %p113 = scmp.ne.s32.totalorder %s96, %s112
      %p114 = scmp.eq.s32.totalorder %s20, 0
      %p115 = por %p113, %p114
      %p116 = scmp.le.s32.totalorder 1, %s14
      %p117 = scmp.lt.s32.totalorder %s14, 3
      %p118 = pnand %p116, %p117
      %p119 = pneg %p118
      // Predicated region
      $region9: #{tpu_custom_call.1} parent=5 // pred_check
        _
      $region10: #{tpu_custom_call.1} parent=5 // pred_check_branch
        %121 = sbr.rel (%p118) target = $region12
      $region11: #{tpu_custom_call.1} parent=5 // pred_region
        %s122 = ssub.s32 %s14, 1
      $region12: #{tpu_custom_call.1} parent=5 // pred_fallthru
        _
      %p123 = scmp.lt.s32.totalorder %s14, 2
      // Predicated region
      $region13: #{tpu_custom_call.1} parent=5 // pred_check
        %p124 = pneg %p123
      $region14: #{tpu_custom_call.1} parent=5 // pred_check_branch
        %126 = sbr.rel (%p124) target = $region16
      $region15: #{tpu_custom_call.1} parent=5 // pred_region
        // Predicated region
        $region17: #{tpu_custom_call.1} parent=15 // pred_check
          %p127 = pneg %p46
        $region18: #{tpu_custom_call.1} parent=15 // pred_check_branch
          %129 = sbr.rel (%p127) target = $region20
        $region19: #{tpu_custom_call.1} parent=15 // pred_region
          %s130 = sand.u32 %s36, 1
          %s131 = scalar_lea.sflag [#allocation3], %s130
          %s132 = sand.u32 %s36, 1
          %s133 = smul.addr %s132, 8
          %s134 = scalar_lea.vmem [#allocation2], %s133
          %s136 = ssub.s32 128, 128
          %137 = vsyncadd %s131, %s136
          %s138 = smul.addr %s21, 2
          %s139 = smul.addr %s138, 64
          %s140 = scalar_lea.hbm %s0, %s139
          %s141 = sshll.u32 %s134, 4
          %s142 = int_to_ptr.vmem [resolvable:$true] %s141
          %147 = dma.hbm_to_vmem [thread:$0]  %s140, 128, %s142, %s131, 64, 64, 4
        $region20: #{tpu_custom_call.1} parent=15 // pred_fallthru
          _
        // Predicated region
        $region21: #{tpu_custom_call.1} parent=15 // pred_check
          %p148 = pneg %p74
        $region22: #{tpu_custom_call.1} parent=15 // pred_check_branch
          %150 = sbr.rel (%p148) target = $region24
        $region23: #{tpu_custom_call.1} parent=15 // pred_region
          %s151 = sand.u32 %s64, 1
          %s152 = scalar_lea.sflag [#allocation5], %s151
          %s153 = sand.u32 %s64, 1
          %s154 = smul.addr %s153, 32
          %s155 = scalar_lea.vmem [#allocation4], %s154
          %s156 = smul.u32 4, %s22
          %s158 = ssub.s32 512, 512
          %159 = vsyncadd %s152, %s158
          %s160 = smul.addr %s21, 8
          %s161 = sadd.s32 %s156, %s160
          %s162 = smul.addr %s161, 64
          %s163 = scalar_lea.hbm %s1, %s162
          %s164 = sshll.u32 %s155, 4
          %s165 = int_to_ptr.vmem [resolvable:$true] %s164
          %170 = dma.hbm_to_vmem [thread:$0]  %s163, 512, %s165, %s152, 256, 256, 16
        $region24: #{tpu_custom_call.1} parent=15 // pred_fallthru
          _
      $region16: #{tpu_custom_call.1} parent=5 // pred_fallthru
        _
      %p171 = scmp.le.s32.totalorder 1, %s14
      %p172 = scmp.lt.s32.totalorder %s14, 3
      %p173 = pnand %p171, %p172
      %p174 = pneg %p173
      // Predicated region
      $region25: #{tpu_custom_call.1} parent=5 // pred_check
        _
      $region26: #{tpu_custom_call.1} parent=5 // pred_check_branch
        %176 = sbr.rel (%p173) target = $region28
      $region27: #{tpu_custom_call.1} parent=5 // pred_region
        %s177 = ssub.s32 %s14, 1
        %s178 = sand.u32 %s39, 1
        %s179 = scalar_lea.sflag [#allocation3], %s178
        %s180 = sand.u32 %s39, 1
        %s181 = smul.addr %s180, 8
        %s182 = scalar_lea.vmem [#allocation2], %s181
        // Predicated region
        $region29: #{tpu_custom_call.1} parent=27 // pred_check
          %p183 = pneg %p52
        $region30: #{tpu_custom_call.1} parent=27 // pred_check_branch
          %185 = sbr.rel (%p183) target = $region32
        $region31: #{tpu_custom_call.1} parent=27 // pred_region
          %186 = dma.done %s179, 128
        $region32: #{tpu_custom_call.1} parent=27 // pred_fallthru
          _
        %s187 = sand.u32 %s67, 1
        %s188 = scalar_lea.sflag [#allocation5], %s187
        %s189 = sand.u32 %s67, 1
        %s190 = smul.addr %s189, 32
        %s191 = scalar_lea.vmem [#allocation4], %s190
        // Predicated region
        $region33: #{tpu_custom_call.1} parent=27 // pred_check
          %p192 = pneg %p80
        $region34: #{tpu_custom_call.1} parent=27 // pred_check_branch
          %194 = sbr.rel (%p192) target = $region36
        $region35: #{tpu_custom_call.1} parent=27 // pred_region
          %195 = dma.done %s188, 512
        $region36: #{tpu_custom_call.1} parent=27 // pred_fallthru
          _
        %s196 = sand.u32 %s39, 1
        %s197 = scalar_lea.sflag [#allocation3], %s196
        %s198 = sand.u32 %s39, 1
        %s199 = smul.addr %s198, 8
        %s200 = scalar_lea.vmem [#allocation2], %s199
        %p201 = pneg %p52
        %p202 = pneg %p49
        %s203 = sand.u32 %s67, 1
        %s204 = scalar_lea.sflag [#allocation5], %s203
        %s205 = sand.u32 %s67, 1
        %s206 = smul.addr %s205, 32
        %s207 = scalar_lea.vmem [#allocation4], %s206
        %p208 = pneg %p80
        %p209 = pneg %p77
        %p210 = pneg %p108
        %p211 = pneg %p105
        %s212 = smul.u32 4, %s24
        %p213 = scmp.lt.s32.totalorder %s23, 1
        %s214 = scalar_select %p213, %s23, 1
        %p215 = scmp.lt.s32.totalorder %s212, 3
        %s216 = scalar_select %p215, %s212, 3
        %s217 = smul.addr %s214, 4
        %s218 = sadd.s32 %s216, %s217
        %s219 = scalar_lea.vmem %s2, %s218
        %s220 = smul.u32 4, %s24
        %s221 = smul.u32 4, %s24
        %p222 = scmp.lt.s32.totalorder %s23, 1
        %s223 = scalar_select %p222, %s23, 1
        %p224 = scmp.lt.s32.totalorder %s221, 3
        %s225 = scalar_select %p224, %s221, 3
        %s226 = smul.addr %s223, 4
        %s227 = sadd.s32 %s225, %s226
        %s228 = scalar_lea.vmem %s2, %s227
        %s229 = smul.u32 4, %s24
        %v232 = vld [vmem:[%s182] sm:$0xf]
        %v233 = vld [vmem:[%s182 + $0x4] sm:$0xf]
        %v234 = vld [vmem:[%s191] sm:$0xff]
        %v235 = vld [vmem:[%s191 + $0x8] sm:$0xff]
        %v236 = vld [vmem:[%s191 + $0x10] sm:$0xff]
        %v237 = vld [vmem:[%s191 + $0x18] sm:$0xff]
        %v238 = vxor.u32 %v234, 2147516416
        %v239 = vxor.u32 %v235, 2147516416
        %v240 = vxor.u32 %v236, 2147516416
        %v241 = vxor.u32 %v237, 2147516416
        %v243 = vmul.bf16 %v238, 1069105081
        %v244 = vpow.bf16.pop %v243
        %v246 = vmul.bf16 %v239, 1069105081
        %v247 = vpow.bf16.pop %v246
        %v249 = vmul.bf16 %v240, 1069105081
        %v250 = vpow.bf16.pop %v249
        %v252 = vmul.bf16 %v241, 1069105081
        %v253 = vpow.bf16.pop %v252
        %v254 = vadd.bf16 %v244, 1065369472
        %v255 = vadd.bf16 %v247, 1065369472
        %v256 = vadd.bf16 %v250, 1065369472
        %v257 = vadd.bf16 %v253, 1065369472
        %v258 = vrcp.bf16.pop %v254
        %v259 = vmul.bf16 1065369472, %v258
        %v260 = vrcp.bf16.pop %v255
        %v261 = vmul.bf16 1065369472, %v260
        %v262 = vrcp.bf16.pop %v256
        %v263 = vmul.bf16 1065369472, %v262
        %v264 = vrcp.bf16.pop %v257
        %v265 = vmul.bf16 1065369472, %v264
        %v268 = vunpack.c.l.b16 %v232
        %v269 = vunpack.c.l.b16 %v233
        %v270 = vpack.c.b16 %v269, %v268
        %272 = vxpose.xlu0.c.b16.start [1/8] %v270, 128
        %273 = vxpose.xlu0.c.b16.cont [2/8] 0, 128
        %274 = vxpose.xlu0.c.b16.cont [3/8] 0, 128
        %275 = vxpose.xlu0.c.b16.cont [4/8] 0, 128
        %276 = vxpose.xlu0.c.b16.cont [5/8] 0, 128
        %277 = vxpose.xlu0.c.b16.cont [6/8] 0, 128
        %278 = vxpose.xlu0.c.b16.cont [7/8] 0, 128
        %279 = vxpose.xlu0.c.b16.end [8/8] 0, 128
        %v280 = vpop.trf.xlu0
        %v281 = vpop.trf.xlu0
        %v282 = vpop.trf.xlu0
        %v283 = vpop.trf.xlu0
        %v284 = vpop.trf.xlu0
        %v285 = vpop.trf.xlu0
        %v286 = vpop.trf.xlu0
        %v287 = vpop.trf.xlu0
        %v292 = vunpack.c.l.b16 %v259
        %v293 = vunpack.c.h.b16 %v259
        %v294 = vunpack.c.l.b16 %v261
        %v295 = vunpack.c.h.b16 %v261
        %v296 = vunpack.c.l.b16 %v263
        %v297 = vunpack.c.h.b16 %v263
        %v298 = vunpack.c.l.b16 %v265
        %v299 = vunpack.c.h.b16 %v265
        %v300 = vpack.c.b16 %v296, %v292
        %v301 = vpack.c.b16 %v297, %v293
        %v302 = vpack.c.b16 %v298, %v294
        %v303 = vpack.c.b16 %v299, %v295
        %vm308 = vcmask 130048
        %v310 = vsel %vm308, %v280, 0
        %v313 = vsel %vm308, %v281, 0
        %315 = vmatprep.subr.bf16.mxu0 %v301
        %316 = vmatpush1.bf16.msra.mxu0 %v300
        %317 = vmatprep.subr.bf16.mxu0 0
        %318 = vmatpush1.bf16.msra.mxu0 0
        %319 = vmatprep.subr.bf16.mxu0 0
        %320 = vmatpush1.bf16.msra.mxu0 0
        %321 = vmatprep.subr.bf16.mxu0 0
        %322 = vmatpush1.bf16.msra.mxu0 0
        %323 = vmatprep.subr.bf16.mxu0 0
        %324 = vmatpush1.bf16.msra.mxu0 0
        %325 = vmatprep.subr.bf16.mxu0 0
        %326 = vmatpush1.bf16.msra.mxu0 0
        %327 = vmatprep.subr.bf16.mxu0 0
        %328 = vmatpush1.bf16.msra.mxu0 0
        %329 = vmatprep.subr.bf16.mxu0 0
        %330 = vmatpush1.bf16.msra.mxu0 0
        %331 = vmatprep.subr.bf16.mxu0 0
        %332 = vmatpush1.bf16.msra.mxu0 0
        %333 = vmatprep.subr.bf16.mxu0 0
        %334 = vmatpush1.bf16.msra.mxu0 0
        %335 = vmatprep.subr.bf16.mxu0 0
        %336 = vmatpush1.bf16.msra.mxu0 0
        %337 = vmatprep.subr.bf16.mxu0 0
        %338 = vmatpush1.bf16.msra.mxu0 0
        %339 = vmatprep.subr.bf16.mxu0 0
        %340 = vmatpush1.bf16.msra.mxu0 0
        %341 = vmatprep.subr.bf16.mxu0 0
        %342 = vmatpush1.bf16.msra.mxu0 0
        %343 = vmatprep.subr.bf16.mxu0 0
        %344 = vmatpush1.bf16.msra.mxu0 0
        %345 = vmatprep.subr.bf16.mxu0 0
        %346 = vmatpush1.bf16.msra.mxu0 0
        %347 = vmatprep.mubr.bf16.mxu0 0
        %348 = vmatmul.mubr.bf16.gmra.mrb[0].mxu0 %v310
        %v349 = vpop.f32.mrb[0].mxu0
        %v350 = vadd.f32 0.0, %v349
        %v351 = vpop.f32.mrb[0].mxu0
        %v352 = vadd.f32 0.0, %v351
        %v353 = vpop.f32.mrb[0].mxu0
        %v354 = vadd.f32 0.0, %v353
        %v355 = vpop.f32.mrb[0].mxu0
        %v356 = vadd.f32 0.0, %v355
        %357 = vmatprep.mubr.bf16.mxu0 0
        %358 = vmatmul.mubr.bf16.gmra.mrb[0].mxu0 %v313
        %v359 = vpop.f32.mrb[0].mxu0
        %v360 = vadd.f32 0.0, %v359
        %v361 = vpop.f32.mrb[0].mxu0
        %v362 = vadd.f32 0.0, %v361
        %v363 = vpop.f32.mrb[0].mxu0
        %v364 = vpop.f32.mrb[0].mxu0
        %365 = vdwg.mxu0
        %366 = vmatprep.subr.bf16.mxu0 %v303
        %367 = vmatpush1.bf16.msra.mxu0 %v302
        %368 = vmatprep.subr.bf16.mxu0 0
        %369 = vmatpush1.bf16.msra.mxu0 0
        %370 = vmatprep.subr.bf16.mxu0 0
        %371 = vmatpush1.bf16.msra.mxu0 0
        %372 = vmatprep.subr.bf16.mxu0 0
        %373 = vmatpush1.bf16.msra.mxu0 0
        %374 = vmatprep.subr.bf16.mxu0 0
        %375 = vmatpush1.bf16.msra.mxu0 0
        %376 = vmatprep.subr.bf16.mxu0 0
        %377 = vmatpush1.bf16.msra.mxu0 0
        %378 = vmatprep.subr.bf16.mxu0 0
        %379 = vmatpush1.bf16.msra.mxu0 0
        %380 = vmatprep.subr.bf16.mxu0 0
        %381 = vmatpush1.bf16.msra.mxu0 0
        %382 = vmatprep.subr.bf16.mxu0 0
        %383 = vmatpush1.bf16.msra.mxu0 0
        %384 = vmatprep.subr.bf16.mxu0 0
        %385 = vmatpush1.bf16.msra.mxu0 0
        %386 = vmatprep.subr.bf16.mxu0 0
        %387 = vmatpush1.bf16.msra.mxu0 0
        %388 = vmatprep.subr.bf16.mxu0 0
        %389 = vmatpush1.bf16.msra.mxu0 0
        %390 = vmatprep.subr.bf16.mxu0 0
        %391 = vmatpush1.bf16.msra.mxu0 0
        %392 = vmatprep.subr.bf16.mxu0 0
        %393 = vmatpush1.bf16.msra.mxu0 0
        %394 = vmatprep.subr.bf16.mxu0 0
        %395 = vmatpush1.bf16.msra.mxu0 0
        %396 = vmatprep.subr.bf16.mxu0 0
        %397 = vmatpush1.bf16.msra.mxu0 0
        %398 = vmatprep.mubr.bf16.mxu0 0
        %399 = vmatmul.mubr.bf16.gmra.mrb[0].mxu0 %v310
        %v400 = vpop.f32.mrb[0].mxu0
        %v401 = vadd.f32 0.0, %v400
        %v402 = vpop.f32.mrb[0].mxu0
        %v403 = vadd.f32 0.0, %v402
        %v404 = vpop.f32.mrb[0].mxu0
        %v405 = vadd.f32 0.0, %v404
        %v406 = vpop.f32.mrb[0].mxu0
        %v407 = vadd.f32 0.0, %v406
        %408 = vmatprep.mubr.bf16.mxu0 0
        %409 = vmatmul.mubr.bf16.gmra.mrb[0].mxu0 %v313
        %v410 = vpop.f32.mrb[0].mxu0
        %v411 = vadd.f32 0.0, %v410
        %v412 = vpop.f32.mrb[0].mxu0
        %v413 = vadd.f32 0.0, %v412
        %v414 = vpop.f32.mrb[0].mxu0
        %v415 = vpop.f32.mrb[0].mxu0
        %416 = vdwg.mxu0
        %v417 = vmax.f32 %v350, %v354
        %vm418 = vcmask 1040384
        %v419 = vsel %vm418, %v360, -inf
        %v420 = vmax.f32 %v417, %v419
        %v421 = vrot.slane %v420, 4
        %v422 = vmax.f32 %v420, %v421
        %v423 = vrot.slane %v422, 2
        %v424 = vmax.f32 %v422, %v423
        %v425 = vrot.slane %v424, 1
        %v426 = vmax.f32 %v424, %v425
        %v427 = vmax.f32 %v352, %v356
        %v428 = vsel %vm418, %v362, -inf
        %v429 = vmax.f32 %v427, %v428
        %v430 = vrot.slane %v429, 4
        %v431 = vmax.f32 %v429, %v430
        %v432 = vrot.slane %v431, 2
        %v433 = vmax.f32 %v431, %v432
        %v434 = vrot.slane %v433, 1
        %v435 = vmax.f32 %v433, %v434
        %v436 = vmax.f32 %v401, %v405
        %v437 = vsel %vm418, %v411, -inf
        %v438 = vmax.f32 %v436, %v437
        %v439 = vrot.slane %v438, 4
        %v440 = vmax.f32 %v438, %v439
        %v441 = vrot.slane %v440, 2
        %v442 = vmax.f32 %v440, %v441
        %v443 = vrot.slane %v442, 1
        %v444 = vmax.f32 %v442, %v443
        %v445 = vmax.f32 %v403, %v407
        %v446 = vsel %vm418, %v413, -inf
        %v447 = vmax.f32 %v445, %v446
        %v448 = vrot.slane %v447, 4
        %v449 = vmax.f32 %v447, %v448
        %v450 = vrot.slane %v449, 2
        %v451 = vmax.f32 %v449, %v450
        %v452 = vrot.slane %v451, 1
        %v453 = vmax.f32 %v451, %v452
        %v454 = vlaneseq
        %v455 = vshrl.u32 %v454, 7
        %v456 = vadd.s32 %v455, 8
        %v457 = vadd.s32 %v455, 16
        %vm458 = vcmp.eq.f32.partialorder %v350, %v426
        %vm459 = vcmp.eq.f32.partialorder %v352, %v435
        %vm460 = vcmp.eq.f32.partialorder %v401, %v444
        %vm461 = vcmp.eq.f32.partialorder %v403, %v453
        %vm462 = vcmp.eq.f32.partialorder %v354, %v426
        %vm463 = vcmp.eq.f32.partialorder %v356, %v435
        %vm464 = vcmp.eq.f32.partialorder %v405, %v444
        %vm465 = vcmp.eq.f32.partialorder %v407, %v453
        %vm466 = vcmp.eq.f32.partialorder %v360, %v426
        %vm467 = vcmp.eq.f32.partialorder %v362, %v435
        %vm468 = vcmp.eq.f32.partialorder %v411, %v444
        %vm469 = vcmp.eq.f32.partialorder %v413, %v453
        %v470 = vsel %vm458, %v455, 17
        %v471 = vsel %vm459, %v455, 17
        %v472 = vsel %vm460, %v455, 17
        %v473 = vsel %vm461, %v455, 17
        %v474 = vsel %vm462, %v456, 17
        %v475 = vsel %vm463, %v456, 17
        %v476 = vsel %vm464, %v456, 17
        %v477 = vsel %vm465, %v456, 17
        %v478 = vsel %vm466, %v457, 17
        %v479 = vsel %vm467, %v457, 17
        %v480 = vsel %vm468, %v457, 17
        %v481 = vsel %vm469, %v457, 17
        %vm482 = vcmp.lt.s32.totalorder %v470, %v474
        %v483 = vsel %vm482, %v470, %v474
        %v484 = vsel %vm418, %v478, 2147483647
        %vm485 = vcmp.lt.s32.totalorder %v483, %v484
        %v486 = vsel %vm485, %v483, %v484
        %v487 = vrot.slane %v486, 4
        %vm488 = vcmp.lt.s32.totalorder %v486, %v487
        %v489 = vsel %vm488, %v486, %v487
        %v490 = vrot.slane %v489, 2
        %vm491 = vcmp.lt.s32.totalorder %v489, %v490
        %v492 = vsel %vm491, %v489, %v490
        %v493 = vrot.slane %v492, 1
        %vm494 = vcmp.lt.s32.totalorder %v492, %v493
        %v495 = vsel %vm494, %v492, %v493
        %vm496 = vcmp.lt.s32.totalorder %v471, %v475
        %v497 = vsel %vm496, %v471, %v475
        %v498 = vsel %vm418, %v479, 2147483647
        %vm499 = vcmp.lt.s32.totalorder %v497, %v498
        %v500 = vsel %vm499, %v497, %v498
        %v501 = vrot.slane %v500, 4
        %vm502 = vcmp.lt.s32.totalorder %v500, %v501
        %v503 = vsel %vm502, %v500, %v501
        %v504 = vrot.slane %v503, 2
        %vm505 = vcmp.lt.s32.totalorder %v503, %v504
        %v506 = vsel %vm505, %v503, %v504
        %v507 = vrot.slane %v506, 1
        %vm508 = vcmp.lt.s32.totalorder %v506, %v507
        %v509 = vsel %vm508, %v506, %v507
        %vm510 = vcmp.lt.s32.totalorder %v472, %v476
        %v511 = vsel %vm510, %v472, %v476
        %v512 = vsel %vm418, %v480, 2147483647
        %vm513 = vcmp.lt.s32.totalorder %v511, %v512
        %v514 = vsel %vm513, %v511, %v512
        %v515 = vrot.slane %v514, 4
        %vm516 = vcmp.lt.s32.totalorder %v514, %v515
        %v517 = vsel %vm516, %v514, %v515
        %v518 = vrot.slane %v517, 2
        %vm519 = vcmp.lt.s32.totalorder %v517, %v518
        %v520 = vsel %vm519, %v517, %v518
        %v521 = vrot.slane %v520, 1
        %vm522 = vcmp.lt.s32.totalorder %v520, %v521
        %v523 = vsel %vm522, %v520, %v521
        %vm524 = vcmp.lt.s32.totalorder %v473, %v477
        %v525 = vsel %vm524, %v473, %v477
        %v526 = vsel %vm418, %v481, 2147483647
        %vm527 = vcmp.lt.s32.totalorder %v525, %v526
        %v528 = vsel %vm527, %v525, %v526
        %v529 = vrot.slane %v528, 4
        %vm530 = vcmp.lt.s32.totalorder %v528, %v529
        %v531 = vsel %vm530, %v528, %v529
        %v532 = vrot.slane %v531, 2
        %vm533 = vcmp.lt.s32.totalorder %v531, %v532
        %v534 = vsel %vm533, %v531, %v532
        %v535 = vrot.slane %v534, 1
        %vm536 = vcmp.lt.s32.totalorder %v534, %v535
        %v537 = vsel %vm536, %v534, %v535
        %vm538 = vcmp.lt.f32.partialorder %v426, 0.01
        %vm539 = vcmp.lt.f32.partialorder %v435, 0.01
        %vm540 = vcmp.lt.f32.partialorder %v444, 0.01
        %vm541 = vcmp.lt.f32.partialorder %v453, 0.01
        %v542 = vsel %vm538, 17, %v495
        %v543 = vsel %vm539, 17, %v509
        %v544 = vsel %vm540, 17, %v523
        %v545 = vsel %vm541, 17, %v537
        %vm546 = vcmp.lt.s32.totalorder %v542, 17
        %v547 = vsel %vm546, %v542, 17
        %vm548 = vcmp.lt.s32.totalorder %v543, 17
        %v549 = vsel %vm548, %v543, 17
        %vm550 = vcmp.lt.s32.totalorder %v544, 17
        %v551 = vsel %vm550, %v544, 17
        %vm552 = vcmp.lt.s32.totalorder %v545, 17
        %v553 = vsel %vm552, %v545, 17
        %v554 = vpack.c.b16 %v547, %v547
        %v555 = vpack.c.b8 %v554, %v554
        %v556 = vpack.c.b16 %v549, %v549
        %v557 = vpack.c.b8 %v556, %v556
        %v558 = vpack.c.b16 %v551, %v551
        %v559 = vpack.c.b8 %v558, %v558
        %v560 = vpack.c.b16 %v553, %v553
        %v561 = vpack.c.b8 %v560, %v560
        %v562 = vcombine.low %v555, %v557
        %v563 = vcombine.low %v559, %v561
        %v565 = vunpack.c.l.s4 1966171168
        %v566 = vunpack.c.0.s8 %v565
        %v567 = vlaneseq
        %v568 = vshrl.u32 %v567, 7
        %v569 = vsub.s32 %v566, %v568
        %v570 = vrot.slane %v562, %v569
        %v572 = vunpack.c.l.s4 1966171168
        %v573 = vunpack.c.0.s8 %v572
        %v574 = vlaneseq
        %v575 = vshrl.u32 %v574, 7
        %v576 = vsub.s32 %v573, %v575
        %v577 = vrot.slane %v563, %v576
        %v578 = vcombine.low %v570, %v577
        %v580 = vunpack.c.l.s4 1966171168
        %v581 = vunpack.c.0.s8 %v580
        %v582 = vlaneseq
        %v583 = vshrl.u32 %v582, 7
        %v584 = vsub.s32 %v581, %v583
        %v585 = vrot.slane %v578, %v584
        %vm586 = vcmask 1040384
        %vm587 = vsmask.f32 0
        %vm588 = vmand %vm586, %vm587
        %vm589 = vcmask 1041409
        %vm590 = vsmask.f32 1024
        %vm591 = vmand %vm589, %vm590
        %vm592 = vmor %vm591, %vm588
        %vm593 = vcmask 1042434
        %vm594 = vsmask.f32 2048
        %vm595 = vmand %vm593, %vm594
        %vm596 = vmor %vm595, %vm592
        %vm597 = vcmask 1043459
        %vm598 = vsmask.f32 3072
        %vm599 = vmand %vm597, %vm598
        %vm600 = vmor %vm599, %vm596
        %v601 = vld [vmem:[%s228] sm:$0xf]
        %v602 = vsel %vm600, %v585, %v601
        %603 = vst [vmem:[%s228] sm:$0xf] %v602
        %s604 = smul.u32 4, %s24
        %p605 = scmp.lt.s32.totalorder %s23, 1
        %s606 = scalar_select %p605, %s23, 1
        %p607 = scmp.lt.s32.totalorder %s604, 3
        %s608 = scalar_select %p607, %s604, 3
        %s609 = smul.addr %s606, 4
        %s610 = sadd.s32 %s608, %s609
        %s611 = scalar_lea.vmem %s2, %s610
        // Predicated region
        $region37: #{tpu_custom_call.1} parent=27 // pred_check
          %p612 = pneg %p105
        $region38: #{tpu_custom_call.1} parent=27 // pred_check_branch
          %614 = sbr.rel (%p612) target = $region40
        $region39: #{tpu_custom_call.1} parent=27 // pred_region
          %s615 = smul.u32 4, %s24
        $region40: #{tpu_custom_call.1} parent=27 // pred_fallthru
          _
      $region28: #{tpu_custom_call.1} parent=5 // pred_fallthru
        _
      %p616 = scmp.le.s32.totalorder 2, %s14
      // Predicated region
      $region41: #{tpu_custom_call.1} parent=5 // pred_check
        %p617 = pneg %p616
      $region42: #{tpu_custom_call.1} parent=5 // pred_check_branch
        %619 = sbr.rel (%p617) target = $region44
      $region43: #{tpu_custom_call.1} parent=5 // pred_region
        %s620 = ssub.s32 %s14, 2
        // Predicated region
        $region45: #{tpu_custom_call.1} parent=43 // pred_check
          %p621 = pneg %p111
        $region46: #{tpu_custom_call.1} parent=43 // pred_check_branch
          %623 = sbr.rel (%p621) target = $region48
        $region47: #{tpu_custom_call.1} parent=43 // pred_region
          %s624 = smul.u32 4, %s26
          %p625 = scmp.lt.s32.totalorder %s25, 1
          %s626 = scalar_select %p625, %s25, 1
          %p627 = scmp.lt.s32.totalorder %s624, 3
          %s628 = scalar_select %p627, %s624, 3
          %s629 = smul.addr %s626, 4
          %s630 = sadd.s32 %s628, %s629
          %s631 = scalar_lea.vmem %s2, %s630
        $region48: #{tpu_custom_call.1} parent=43 // pred_fallthru
          _
      $region44: #{tpu_custom_call.1} parent=5 // pred_fallthru
        _
    $region6: #{tpu_custom_call.1} parent=1 // loop_footer
      %s18 = sadd.s32 1, %s14
    $region7: #{tpu_custom_call.1} parent=1 // loop_footer_branch
      %13 = sbr.rel target = $region3
    $region8: #{tpu_custom_call.1} parent=1 // loop_exit
      _
    %632 = vsyncpa [#allocation3], 1
    %s633 = scalar_lea.sflag [#allocation3], 1
    %634 = vsyncpa %s633, 1
    %635 = vsyncpa [#allocation5], 1
    %s636 = scalar_lea.sflag [#allocation5], 1
    %637 = vsyncpa %s636, 1

</llo_original>
